<compile_context>
chip_gen: v6e
topology: v6e:2x2x1
jax: 0.10.0
libtpu: 0.0.40
codegen_flags: <defaults>
</compile_context>

<pallas_src>
import functools
import math

import jax
import jax.numpy as jnp
from jax import lax
from jax.experimental import pallas as pl
from jax.experimental.pallas import tpu as pltpu


# ----------------------------- small math helpers (in-kernel) ----------------

def _sigmoid(x):
    # 0.5*(1+tanh(x/2)): exact sigmoid, no divide, uses the EUP tanh unit.
    return 0.5 * (jnp.tanh(0.5 * x) + 1.0)


def _gelu(x):
    # TODO(synk): PyTorch nn.GELU default is exact (erf); tanh approximation used.
    c = 0.7978845608028654  # sqrt(2/pi)
    return 0.5 * x * (1.0 + jnp.tanh(c * (x + 0.044715 * x * x * x)))


def _softplus(x):
    return jnp.log(1.0 + jnp.exp(-jnp.abs(x))) + jnp.maximum(x, 0.0)


# ----------------------------- tiling helpers ---------------------------------

def _round_up(x, m):
    return ((x + m - 1) // m) * m


def _time_chunk(T, B, Hp, budget_bytes=8 << 20, cap=64):
    """Largest divisor of T that fits a conservative VMEM budget for the
    double-buffered streamed blocks (xproj + y), capped at `cap` timesteps."""
    per_t = 2 * B * (3 * Hp + Hp) * 4          # xproj + y, f32, double-buffered
    cap = max(1, min(cap, budget_bytes // max(per_t, 1)))
    tc = 1
    for d in range(1, min(T, cap) + 1):
        if T % d == 0:
            tc = d
    return tc


def _row_tile(R, cap=512):
    """Row tile for parallel row-grid kernels.  Rows are zero-padded to a
    multiple of the tile, so any R is handled without degenerate tiles."""
    R = max(R, 1)
    nb = -(-R // cap) if R > cap else 1
    rt = -(-R // nb)
    rt = _round_up(rt, 8)
    return min(rt, max(cap, 8))


def _pad_rows(a, Rp):
    R = a.shape[0]
    if Rp == R:
        return a
    return jnp.pad(a, ((0, Rp - R),) + ((0, 0),) * (a.ndim - 1))


# ----------------------------- parallel linear (input projection) ------------

def _matmul_bias_kernel(x_ref, w_ref, b_ref, o_ref):
    w = w_ref[...]
    x = x_ref[...].astype(w.dtype)             # bf16 at the MXU boundary
    o_ref[...] = (jnp.dot(x, w, preferred_element_type=jnp.float32)
                  + b_ref[...])


def rows_linear(x, w, b):
    """(R, D) @ (D, N) + (1, N) with a parallel row grid (rows zero-padded)."""
    R, D = x.shape
    N = w.shape[1]
    rt = _row_tile(R)
    Rp = _round_up(R, rt)
    xp = _pad_rows(x, Rp)
    out = pl.pallas_call(
        _matmul_bias_kernel,
        grid_spec=pltpu.PrefetchScalarGridSpec(
            num_scalar_prefetch=0,
            grid=(Rp // rt,),
            in_specs=[
                pl.BlockSpec((rt, D), lambda r: (r, 0)),
                pl.BlockSpec((D, N), lambda r: (0, 0)),
                pl.BlockSpec((1, N), lambda r: (0, 0)),
            ],
            out_specs=pl.BlockSpec((rt, N), lambda r: (r, 0)),
        ),
        out_shape=jax.ShapeDtypeStruct((Rp, N), jnp.float32),
        compiler_params=pltpu.CompilerParams(dimension_semantics=("parallel",)),
    )(xp, w, b)
    return out[:R] if Rp != R else out


# ----------------------------- fused multi-layer GRU kernel -------------------
# Grid: time chunks (serial).  Per chunk: partially-unrolled fori_loop over
# timesteps; inside each timestep the L hidden-side matmuls are issued first
# (they only depend on the t-1 state), then the layers are walked.  The (L,B,Hp)
# hidden state lives in the resident hT output block (constant out-block index).

def _fused_gru_kernel(xproj_ref, h0_ref, wh_ref, bhn_ref, wi_ref, bi_ref,
                      y_ref, hT_ref, *, num_layers, tc, hidden_p, unroll):
    Hp = hidden_p
    c = pl.program_id(0)

    @pl.when(c == 0)
    def _():
        hT_ref[...] = h0_ref[...]

    def gate_update(xg, gh, h, bhn):
        # Lane-aligned gate slices (Hp is a multiple of 128).
        r = _sigmoid(xg[:, :Hp] + gh[:, :Hp])
        z = _sigmoid(xg[:, Hp:2 * Hp] + gh[:, Hp:2 * Hp])
        n = jnp.tanh(xg[:, 2 * Hp:] + r * (gh[:, 2 * Hp:] + bhn))
        return (1.0 - z) * n + z * h

    hs0 = tuple(hT_ref[l] for l in range(num_layers))

    def step(t, hs):
        hs = list(hs)
        # Hidden-side matmuls only depend on the t-1 state: issue all L
        # back-to-back so the MXU pipeline stays full.
        ghs = []
        for l in range(num_layers):
            w = wh_ref[l]
            ghs.append(jnp.dot(hs[l].astype(w.dtype), w,
                               preferred_element_type=jnp.float32))
        xg = xproj_ref[t]                      # (B, 3Hp), layer-0 biases pre-added
        for l in range(num_layers):
            if l > 0:
                w = wi_ref[l - 1]
                xg = (jnp.dot(hs[l - 1].astype(w.dtype), w,
                              preferred_element_type=jnp.float32)
                      + bi_ref[l - 1])
            hs[l] = gate_update(xg, ghs[l], hs[l], bhn_ref[l])
        y_ref[t] = hs[-1]                      # lane-dense (B, Hp) store
        return tuple(hs)

    hs = lax.fori_loop(0, tc, step, hs0, unroll=unroll)

    for l in range(num_layers):
        hT_ref[l] = hs[l]


def fused_gru(xproj, h0, wh, bhn, wi, bi):
    """xproj: (T, B, 3Hp) time-major (layer-0 input gates, biases included);
    h0: (L, B, Hp).  Returns (y (T,B,Hp), hT (L,B,Hp))."""
    T, B, threeHp = xproj.shape
    Hp = threeHp // 3
    L = h0.shape[0]
    tc = _time_chunk(T, B, Hp)
    unroll = 1
    for u in (8, 4, 2, 1):                     # partial unroll; avoid vreg spills
        if tc % u == 0:
            unroll = u
            break
    kernel = functools.partial(_fused_gru_kernel, num_layers=L, tc=tc,
                               hidden_p=Hp, unroll=unroll)
    # NOTE: on v7x a leading batch-parallel grid axis (2 TensorCores) and
    # pl.Buffered(1) on the constant-index weight specs would be added here.
    y, hT = pl.pallas_call(
        kernel,
        grid_spec=pltpu.PrefetchScalarGridSpec(
            num_scalar_prefetch=0,
            grid=(T // tc,),
            in_specs=[
                pl.BlockSpec((tc, B, threeHp), lambda c: (c, 0, 0)),
                pl.BlockSpec((L, B, Hp), lambda c: (0, 0, 0)),
                pl.BlockSpec(wh.shape, lambda c: (0, 0, 0)),
                pl.BlockSpec(bhn.shape, lambda c: (0, 0, 0)),
                pl.BlockSpec(wi.shape, lambda c: (0, 0, 0)),
                pl.BlockSpec(bi.shape, lambda c: (0, 0, 0)),
            ],
            out_specs=[
                pl.BlockSpec((tc, B, Hp), lambda c: (c, 0, 0)),
                pl.BlockSpec((L, B, Hp), lambda c: (0, 0, 0)),
            ],
        ),
        out_shape=(jax.ShapeDtypeStruct((T, B, Hp), jnp.float32),
                   jax.ShapeDtypeStruct((L, B, Hp), jnp.float32)),
        compiler_params=pltpu.CompilerParams(dimension_semantics=("arbitrary",)),
    )(xproj, h0, wh, bhn, wi, bi)
    return y, hT


# ----------------------------- fused trunk + heads kernel ---------------------

def _fused_head_kernel(*refs, n_trunk, n_cat, n_cont, out_w):
    it = iter(refs)
    feat_ref = next(it)
    mask_ref = next(it)
    trunk = [(next(it), next(it)) for _ in range(n_trunk)]
    cat_mlp = [(next(it), next(it)) for _ in range(n_cat)]
    wcat, bcat = next(it), next(it)
    cont_mlp = [(next(it), next(it)) for _ in range(n_cont)]
    wm, bm = next(it), next(it)
    wa, ba = next(it), next(it)
    wb, bb = next(it), next(it)
    o_ref = next(it)

    def lin(h, w_ref, b_ref, act):
        w = w_ref[...]
        y = (jnp.dot(h.astype(w.dtype), w, preferred_element_type=jnp.float32)
             + b_ref[...])
        return _gelu(y) if act else y

    h = feat_ref[...]
    for w, b in trunk:
        h = lin(h, w, b, True)

    # categorical branch (masked logits)
    hc = h
    for w, b in cat_mlp:
        hc = lin(hc, w, b, True)
    cat_logits = lin(hc, wcat, bcat, False)
    # TODO(synk): exact masking convention of MixedDistributionHead unknown;
    # large negative fill used for masked-out actions.
    cat_logits = jnp.where(mask_ref[...] > 0.0, cat_logits,
                           jnp.full_like(cat_logits, -1e9))

    # continuous (Beta mixture) branch
    hk = h
    for w, b in cont_mlp:
        hk = lin(hk, w, b, True)
    mix = lin(hk, wm, bm, False)
    # TODO(synk): exact Beta parameterization of MixedDistributionHead unknown;
    # softplus(.) + eps keeps concentrations strictly positive.
    alpha = _softplus(lin(hk, wa, ba, False)) + 1e-4
    beta = _softplus(lin(hk, wb, bb, False)) + 1e-4

    parts = [cat_logits, mix, alpha, beta]
    used = sum(p.shape[-1] for p in parts)
    if out_w > used:
        parts.append(jnp.zeros((cat_logits.shape[0], out_w - used), jnp.float32))
    o_ref[...] = jnp.concatenate(parts, axis=-1)   # one lane-dense store


def fused_head(feat, mask, params):
    R, F = feat.shape
    num_cat, num_peaks = params["num_cat"], params["num_peaks"]
    trunk, cat_mlp = params["trunk"], params["cat_mlp"]
    cont_mlp = params["cont_mlp"]
    cat_w, cat_b = params["cat_out"]

    weight_arrays = []
    for w, b in trunk + cat_mlp:
        weight_arrays += [w, b]
    weight_arrays += [cat_w, cat_b]
    for w, b in cont_mlp:
        weight_arrays += [w, b]
    for w, b in params["cont_out"]:
        weight_arrays += [w, b]

    out_w = max(128, _round_up(num_cat + 3 * num_peaks, 128))
    rt = _row_tile(R)
    Rp = _round_up(R, rt)
    featp = _pad_rows(feat, Rp)
    maskp = _pad_rows(mask, Rp)

    in_specs = [pl.BlockSpec((rt, F), lambda r: (r, 0)),
                pl.BlockSpec((rt, num_cat), lambda r: (r, 0))]
    in_specs += [pl.BlockSpec(a.shape, lambda r: (0, 0)) for a in weight_arrays]

    kernel = functools.partial(_fused_head_kernel, n_trunk=len(trunk),
                               n_cat=len(cat_mlp), n_cont=len(cont_mlp),
                               out_w=out_w)
    slab = pl.pallas_call(
        kernel,
        grid_spec=pltpu.PrefetchScalarGridSpec(
            num_scalar_prefetch=0,
            grid=(Rp // rt,),
            in_specs=in_specs,
            out_specs=pl.BlockSpec((rt, out_w), lambda r: (r, 0)),
        ),
        out_shape=jax.ShapeDtypeStruct((Rp, out_w), jnp.float32),
        compiler_params=pltpu.CompilerParams(dimension_semantics=("parallel",)),
    )(featp, maskp, *weight_arrays)
    return slab[:R] if Rp != R else slab


# ----------------------------- Parameter init (deterministic) ----------------

def _uniform(key, shape, bound):
    return jax.random.uniform(key, shape, dtype=jnp.float32,
                              minval=-bound, maxval=bound)


def init_params(key, input_size_recurrent, input_size_regular, hidden_size,
                num_gru_layers, linear_layers, linear_layers_cat,
                linear_layers_cont, num_peaks, num_cat_actions=3):
    keys = iter(jax.random.split(key, 512))
    H, L = hidden_size, num_gru_layers
    Hp = _round_up(H, 128)                     # tile-aligned internal hidden size
    params = dict(in_rec=input_size_recurrent, in_reg=input_size_regular,
                  H=H, Hp=Hp, L=L, num_peaks=num_peaks, num_cat=num_cat_actions)

    # GRU: PyTorch-style U(-1/sqrt(H), 1/sqrt(H)); gate order [r, z, n].
    bnd = 1.0 / math.sqrt(H)

    def pad_gate_cols(w):
        # (..., 3H) -> (..., 3Hp): zero-pad each gate block to Hp lanes.
        parts = []
        for g in range(3):
            blk = w[..., g * H:(g + 1) * H]
            pad = [(0, 0)] * (w.ndim - 1) + [(0, Hp - H)]
            parts.append(jnp.pad(blk, pad))
        return jnp.concatenate(parts, axis=-1)

    wh_all, bhn_all, wi_deep, bi_deep = [], [], [], []
    for layer in range(L):
        d_in = input_size_recurrent if layer == 0 else H
        w_ih = _uniform(next(keys), (d_in, 3 * H), bnd)
        w_hh = _uniform(next(keys), (H, 3 * H), bnd)
        b_ih = _uniform(next(keys), (3 * H,), bnd)
        b_hh = _uniform(next(keys), (3 * H,), bnd)

        # r/z gates absorb both biases; n gate keeps b_hn inside r*(...) term.
        bi_comb = jnp.concatenate([b_ih[:2 * H] + b_hh[:2 * H], b_ih[2 * H:]])
        bi_comb = pad_gate_cols(bi_comb).reshape(1, 3 * Hp)
        bhn = jnp.pad(b_hh[2 * H:], (0, Hp - H)).reshape(1, Hp)

        w_hh_p = jnp.pad(pad_gate_cols(w_hh), ((0, Hp - H), (0, 0)))
        wh_all.append(w_hh_p.astype(jnp.bfloat16))
        bhn_all.append(bhn)

        if layer == 0:
            params["gru_wi0"] = pad_gate_cols(w_ih).astype(jnp.bfloat16)  # (in_rec, 3Hp)
            params["gru_bi0"] = bi_comb                                   # (1, 3Hp) f32
        else:
            w_ih_p = jnp.pad(pad_gate_cols(w_ih), ((0, Hp - H), (0, 0)))
            wi_deep.append(w_ih_p.astype(jnp.bfloat16))
            bi_deep.append(bi_comb)

    params["gru_wh"] = jnp.stack(wh_all)       # (L, Hp, 3Hp) bf16
    params["gru_bhn"] = jnp.stack(bhn_all)     # (L, 1, Hp) f32
    if wi_deep:
        params["gru_wi"] = jnp.stack(wi_deep)  # (L-1, Hp, 3Hp) bf16
        params["gru_bi"] = jnp.stack(bi_deep)  # (L-1, 1, 3Hp) f32
    else:  # dummy (never read when L == 1)
        params["gru_wi"] = jnp.zeros((1, Hp, 3 * Hp), jnp.bfloat16)
        params["gru_bi"] = jnp.zeros((1, 1, 3 * Hp), jnp.float32)

    def mlp(dims):
        layers = []
        for d_in, d_out in zip(dims[:-1], dims[1:]):
            b = 1.0 / math.sqrt(d_in)
            layers.append((_uniform(next(keys), (d_in, d_out), b).astype(jnp.bfloat16),
                           _uniform(next(keys), (1, d_out), b)))
        return layers

    trunk_dims = [H + input_size_regular] + list(linear_layers)
    params["trunk"] = mlp(trunk_dims)
    feat = linear_layers[-1]
    params["cat_mlp"] = mlp([feat] + list(linear_layers_cat))
    bcat = 1.0 / math.sqrt(linear_layers_cat[-1])
    params["cat_out"] = (
        _uniform(next(keys), (linear_layers_cat[-1], num_cat_actions), bcat).astype(jnp.bfloat16),
        _uniform(next(keys), (1, num_cat_actions), bcat))
    params["cont_mlp"] = mlp([feat] + list(linear_layers_cont))
    bcont = 1.0 / math.sqrt(linear_layers_cont[-1])
    params["cont_out"] = [
        (_uniform(next(keys), (linear_layers_cont[-1], num_peaks), bcont).astype(jnp.bfloat16),
         _uniform(next(keys), (1, num_peaks), bcont))
        for _ in range(3)  # mixture logits, alpha raw, beta raw
    ]
    return params


# ----------------------------- Forward ---------------------------------------

def forward(params, x, hidden_state=None, return_sequences=False, action_mask=None):
    """x: (B, T, in_rec + in_reg).  Returns ((cat_logits, mix_logits, alpha, beta), hidden)."""
    B, T, _ = x.shape
    in_rec, in_reg = params["in_rec"], params["in_reg"]
    H, Hp, L = params["H"], params["Hp"], params["L"]
    num_cat, num_peaks = params["num_cat"], params["num_peaks"]
    x = x.astype(jnp.float32)

    # (1) layer-0 input projections for all timesteps at once (off the serial path).
    x_rec_tm = jnp.transpose(x[:, :, :in_rec], (1, 0, 2)).reshape(T * B, in_rec)
    xproj = rows_linear(x_rec_tm, params["gru_wi0"], params["gru_bi0"])
    xproj = xproj.reshape(T, B, 3 * Hp)

    if hidden_state is None:
        h0 = jnp.zeros((L, B, Hp), jnp.float32)
    else:
        h0 = hidden_state.astype(jnp.float32)
        if h0.shape[-1] != Hp:
            h0 = jnp.pad(h0, ((0, 0), (0, 0), (0, Hp - H)))

    # (2) fused multi-layer GRU recurrence (single pallas_call).
    y_tm, hT_p = fused_gru(xproj, h0, params["gru_wh"], params["gru_bhn"],
                           params["gru_wi"], params["gru_bi"])
    new_hidden = hT_p[..., :H]

    if return_sequences:
        gru_out = jnp.transpose(y_tm[..., :H], (1, 0, 2)).reshape(B * T, H)
        reg = x[:, :, in_rec:].reshape(B * T, in_reg)
    else:
        gru_out = hT_p[-1, :, :H]
        reg = x[:, -1, in_rec:]
    feat = jnp.concatenate([gru_out, reg], axis=-1)
    R = feat.shape[0]

    if action_mask is None:
        mask = jnp.ones((R, num_cat), jnp.float32)
    else:
        mask = action_mask.astype(jnp.float32)
        if return_sequences and mask.ndim == 2 and mask.shape[0] == B:
            mask = jnp.broadcast_to(mask[:, None, :], (B, T, num_cat))
        mask = mask.reshape(R, num_cat)

    # (3) fused trunk + heads; single lane-dense (R, 128) slab, sliced here.
    slab = fused_head(feat, mask, params)
    cat_logits = slab[:, :num_cat]
    mix_logits = slab[:, num_cat:num_cat + num_peaks]
    alpha = slab[:, num_cat + num_peaks:num_cat + 2 * num_peaks]
    beta = slab[:, num_cat + 2 * num_peaks:num_cat + 3 * num_peaks]

    if return_sequences:
        cat_logits = cat_logits.reshape(B, T, num_cat)
        mix_logits = mix_logits.reshape(B, T, num_peaks)
        alpha = alpha.reshape(B, T, num_peaks)
        beta = beta.reshape(B, T, num_peaks)

    return (cat_logits, mix_logits, alpha, beta), new_hidden


# ----------------------------- Demo -------------------------------------------

if __name__ == "__main__":
    key = jax.random.PRNGKey(0)
    k_params, k_x = jax.random.split(key)

    input_size_recurrent, input_size_regular = 12, 8
    hidden_size, num_gru_layers = 32, 2
    linear_layers = (64, 32)
    linear_layers_cat = (32,)
    linear_layers_cont = (32,)
    num_peaks = 3
    B, T = 2, 8

    params = init_params(k_params, input_size_recurrent, input_size_regular,
                         hidden_size, num_gru_layers, linear_layers,
                         linear_layers_cat, linear_layers_cont, num_peaks)

    x = jax.random.normal(k_x, (B, T, input_size_recurrent + input_size_regular),
                          dtype=jnp.float32)

    # Last-timestep path.
    (cat_logits, mix_logits, alpha, beta), hidden = forward(
        params, x, hidden_state=None, return_sequences=False, action_mask=None)
    jax.block_until_ready((cat_logits, mix_logits, alpha, beta, hidden))
    assert cat_logits.shape == (B, 3)
    assert mix_logits.shape == (B, num_peaks)
    assert alpha.shape == (B, num_peaks) and beta.shape == (B, num_peaks)
    assert hidden.shape == (num_gru_layers, B, hidden_size)
    assert bool(jnp.all(jnp.isfinite(cat_logits)))
    assert bool(jnp.all(alpha > 0.0)) and bool(jnp.all(beta > 0.0))

    # Full-sequence path (exercise per-timestep outputs + per-env action mask).
    amask = jnp.ones((B, 3), jnp.float32)
    (cat_s, mix_s, alpha_s, beta_s), hidden_s = forward(
        params, x, hidden_state=hidden, return_sequences=True, action_mask=amask)
    jax.block_until_ready((cat_s, mix_s, alpha_s, beta_s, hidden_s))
    assert cat_s.shape == (B, T, 3)
    assert mix_s.shape == (B, T, num_peaks)
    assert alpha_s.shape == (B, T, num_peaks) and beta_s.shape == (B, T, num_peaks)
    assert hidden_s.shape == (num_gru_layers, B, hidden_size)

    print("KERNEL_OK")
</pallas_src>

<mosaic_0001>
module attributes {stable_mosaic.version = 11 : i64} {
  func.func @_matmul_bias_kernel(%arg0: i32, %arg1: memref<16x12xf32, #tpu.memory_space<vmem>>, %arg2: memref<12x384xbf16, #tpu.memory_space<vmem>>, %arg3: memref<1x384xf32, #tpu.memory_space<vmem>>, %arg4: memref<16x384xf32, #tpu.memory_space<vmem>>) attributes {dimension_semantics = [#tpu.dimension_semantics<parallel>], iteration_bounds = array<i64: 1>, scalar_prefetch = 0 : i64, scratch_operands = 0 : i64, tpu.core_type = #tpu.core_type<tc>, window_params = [{transform_indices = @transform_0, window_bounds = array<i64: 16, 12>}, {pipeline_mode = #tpu.pipeline_mode<synchronous>, transform_indices = @transform_1, window_bounds = array<i64: 12, 384>}, {pipeline_mode = #tpu.pipeline_mode<synchronous>, transform_indices = @transform_2, window_bounds = array<i64: 1, 384>}, {transform_indices = @transform_3, window_bounds = array<i64: 16, 384>}]} {
    %c0 = arith.constant 0 : index
    %c0_0 = arith.constant 0 : index
    %0 = vector.load %arg2[%c0, %c0_0] : memref<12x384xbf16, #tpu.memory_space<vmem>>, vector<12x384xbf16>
    %c0_1 = arith.constant 0 : index
    %c0_2 = arith.constant 0 : index
    %1 = vector.load %arg1[%c0_1, %c0_2] : memref<16x12xf32, #tpu.memory_space<vmem>>, vector<16x12xf32>
    %2 = arith.truncf %1 : vector<16x12xf32> to vector<16x12xbf16>
    %cst = arith.constant dense<0.000000e+00> : vector<16x384xf32>
    %3 = tpu.matmul %2, %0, %cst {dimension_numbers = #tpu.dot_dimension_numbers<[1], [0], [0], [1], [0, 0, 1, 1], [], []>} : vector<16x12xbf16>, vector<12x384xbf16>, vector<16x384xf32> -> vector<16x384xf32>
    %c0_3 = arith.constant 0 : index
    %c0_4 = arith.constant 0 : index
    %4 = vector.load %arg3[%c0_3, %c0_4] : memref<1x384xf32, #tpu.memory_space<vmem>>, vector<1x384xf32>
    %5 = vector.broadcast %4 : vector<1x384xf32> to vector<16x384xf32>
    %6 = arith.addf %3, %5 : vector<16x384xf32>
    %c0_5 = arith.constant 0 : index
    %c0_6 = arith.constant 0 : index
    %7 = vector.load %arg4[%c0_5, %c0_6] : memref<16x384xf32, #tpu.memory_space<vmem>>, vector<16x384xf32>
    tpu.vector_store %arg4[%c0_5, %c0_6], %6 {strides = array<i32>} : memref<16x384xf32, #tpu.memory_space<vmem>>, vector<16x384xf32>,
    return
  }
  func.func @transform_0(%arg0: i32) -> (i32, i32) {
    %c0_i32 = arith.constant 0 : i32
    %c0_i32_0 = arith.constant 0 : i32
    return %arg0, %c0_i32 : i32, i32
  }
  func.func @transform_1(%arg0: i32) -> (i32, i32) {
    %c0_i32 = arith.constant 0 : i32
    %c0_i32_0 = arith.constant 0 : i32
    %c0_i32_1 = arith.constant 0 : i32
    return %c0_i32, %c0_i32_0 : i32, i32
  }
  func.func @transform_2(%arg0: i32) -> (i32, i32) {
    %c0_i32 = arith.constant 0 : i32
    %c0_i32_0 = arith.constant 0 : i32
    %c0_i32_1 = arith.constant 0 : i32
    return %c0_i32, %c0_i32_0 : i32, i32
  }
  func.func @transform_3(%arg0: i32) -> (i32, i32) {
    %c0_i32 = arith.constant 0 : i32
    %c0_i32_0 = arith.constant 0 : i32
    return %arg0, %c0_i32 : i32, i32
  }
}

</mosaic_0001>

<llo_original>
// kernel: tpu_custom_call.1
$region0: #{tpu_custom_call.1}
  #allocation0 [shape = 'u32[]', space=smem, size = 0x4, offset = 0x4, fixed_abs, tag = 'smem constant byte address 0x4 - core index']
  #allocation1 [shape = 'u32[144,128]{1,0:T(1,128)}', space=vmem, size = 0x12000, scoped, tag = 'internal scratch']
  %s0 = inlined_call_operand.hbm [shape: f32[16,12], index: 0, kind: input, shape index: {}]
  %s1 = inlined_call_operand.hbm [shape: bf16[12,384], index: 1, kind: input, shape index: {}]
  %s2 = inlined_call_operand.vmem [shape: f32[1,384], index: 2, kind: input, shape index: {}]
  %s3 = inlined_call_operand.hbm [shape: f32[16,384], index: 3, kind: output, shape index: {}]
  %s4 = sld [smem:[#allocation0]]
  $region30: #{tpu_custom_call.1} parent=0
    _
  %s6 = ssub.s32 1, %s4
  %s7 = scalar_select 0, %s6, %s4
  $region1: #{tpu_custom_call.1} parent=0
    #allocation2 [shape = 'u8[8192]{0}', space=vmem, size = 0x2000, scoped, tag = 'input window, operand 0, single buffered']
    #allocation3 [shape = 's32[1]{0}', space=sflag, size = 0x4, scoped, tag = 'scoped memory for tpu_custom_call.1']
    #allocation4 [shape = 's32[1]{0}', space=sflag, size = 0x4, scoped, tag = 'scoped memory for tpu_custom_call.1']
    #allocation5 [shape = 'u8[12288]{0}', space=vmem, size = 0x3000, scoped, tag = 'input window, operand 1, single buffered']
    #allocation6 [shape = 's32[1]{0}', space=sflag, size = 0x4, scoped, tag = 'scoped memory for tpu_custom_call.1']
    #allocation7 [shape = 'u8[24576]{0}', space=vmem, size = 0x6000, scoped, tag = 'output window, operand 0, single buffered']
    %8 = vsyncpa [#allocation3], 0
    %9 = vsyncpa [#allocation6], 0
    %10 = vsyncpa [#allocation4], 0
    // Predicated region
    $region2: #{tpu_custom_call.1} parent=1 // pred_check
      _
    $region3: #{tpu_custom_call.1} parent=1 // pred_check_branch
      %12 = sbr.rel (0) target = $region5
    $region4: #{tpu_custom_call.1} parent=1 // pred_region
      %s14 = ssub.s32 256, 256
      %15 = vsyncadd [#allocation3], %s14
      %s16 = sshll.u32 [#allocation2], 4
      %s17 = int_to_ptr.vmem [resolvable:$true] %s16
      %22 = dma.hbm_to_vmem [thread:$0]  %s0, 256, %s17, [#allocation3], 128, 128, 8
    $region5: #{tpu_custom_call.1} parent=1 // pred_fallthru
      _
    // Predicated region
    $region6: #{tpu_custom_call.1} parent=1 // pred_check
      _
    $region7: #{tpu_custom_call.1} parent=1 // pred_check_branch
      %24 = sbr.rel (0) target = $region9
    $region8: #{tpu_custom_call.1} parent=1 // pred_region
      %s26 = ssub.s32 384, 384
      %27 = vsyncadd [#allocation6], %s26
      %s28 = sshll.u32 [#allocation5], 4
      %s29 = int_to_ptr.vmem [resolvable:$true] %s28
      %34 = dma.hbm_to_vmem [thread:$0]  %s1, 384, %s29, [#allocation6], 192, 192, 12
    $region9: #{tpu_custom_call.1} parent=1 // pred_fallthru
      _
    // Predicated region
    $region10: #{tpu_custom_call.1} parent=1 // pred_check
      _
    $region11: #{tpu_custom_call.1} parent=1 // pred_check_branch
      %36 = sbr.rel (0) target = $region13
    $region12: #{tpu_custom_call.1} parent=1 // pred_region
      _
    $region13: #{tpu_custom_call.1} parent=1 // pred_fallthru
      _
    // Predicated region
    $region14: #{tpu_custom_call.1} parent=1 // pred_check
      _
    $region15: #{tpu_custom_call.1} parent=1 // pred_check_branch
      %38 = sbr.rel (0) target = $region17
    $region16: #{tpu_custom_call.1} parent=1 // pred_region
      %39 = dma.done [#allocation3], 256
    $region17: #{tpu_custom_call.1} parent=1 // pred_fallthru
      _
    // Predicated region
    $region18: #{tpu_custom_call.1} parent=1 // pred_check
      _
    $region19: #{tpu_custom_call.1} parent=1 // pred_check_branch
      %41 = sbr.rel (0) target = $region21
    $region20: #{tpu_custom_call.1} parent=1 // pred_region
      %42 = dma.done [#allocation6], 384
    $region21: #{tpu_custom_call.1} parent=1 // pred_fallthru
      _
    %v44 = vld [vmem:[#allocation5] sm:$0xff]
    %v45 = vld [vmem:[#allocation5 + $0x8] sm:$0xf]
    %v46 = vld [vmem:[#allocation5 + $0xc] sm:$0x33]
    %v47 = vld [vmem:[#allocation5 + $0x14] sm:$0x3]
    %v48 = vld [vmem:[#allocation2] sm:$0xff]
    %v49 = vld [vmem:[#allocation2 + $0x8] sm:$0xff]
    %v50 = vpack.c.bf16 %v49, %v48
    %v51 = vld [vmem:[%s2] sm:$0x7]
    %v53 = vlaneseq
    %v54 = vshrl.u32 %v53, 7
    %v55 = vsub.s32 0, %v54
    %v56 = vrot.slane %v51, %v55
    %v57 = vlaneseq
    %v58 = vshrl.u32 %v57, 7
    %v59 = vsub.s32 1, %v58
    %v60 = vrot.slane %v51, %v59
    %v61 = vlaneseq
    %v62 = vshrl.u32 %v61, 7
    %v63 = vsub.s32 2, %v62
    %v64 = vrot.slane %v51, %v63
    %v72 = vunpack.c.l.b16 %v44
    %v73 = vunpack.c.h.b16 %v44
    %v74 = vunpack.c.l.b16 %v45
    %v75 = vunpack.c.l.b16 %v46
    %v76 = vunpack.c.h.b16 %v46
    %v77 = vunpack.c.l.b16 %v47
    %v78 = vpack.c.b16 %v75, %v72
    %v79 = vpack.c.b16 %v76, %v73
    %v80 = vpack.c.b16 %v77, %v74
    %vm81 = vcmask 97280
    %v83 = vsel %vm81, %v50, 0
    %vm85 = vcmask 1045504
    %v87 = vsel %vm85, %v78, 0
    %v90 = vsel %vm85, %v79, 0
    %v93 = vsel %vm85, %v80, 0
    %95 = vmatprep.subr.bf16.mxu0 0
    %96 = vmatpush1.bf16.msra.mxu0 0
    %97 = vmatprep.subr.bf16.mxu0 0
    %98 = vmatpush1.bf16.msra.mxu0 0
    %99 = vmatprep.subr.bf16.mxu0 0
    %100 = vmatpush1.bf16.msra.mxu0 0
    %101 = vmatprep.subr.bf16.mxu0 0
    %102 = vmatpush1.bf16.msra.mxu0 0
    %103 = vmatprep.subr.bf16.mxu0 0
    %104 = vmatpush1.bf16.msra.mxu0 0
    %105 = vmatprep.subr.bf16.mxu0 0
    %106 = vmatpush1.bf16.msra.mxu0 0
    %107 = vmatprep.subr.bf16.mxu0 0
    %108 = vmatpush1.bf16.msra.mxu0 0
    %109 = vmatprep.subr.bf16.mxu0 %v90
    %110 = vmatpush1.bf16.msra.mxu0 %v87
    %111 = vmatprep.subr.bf16.mxu0 0
    %112 = vmatpush2.bf16.msra.mxu0 0
    %113 = vmatprep.subr.bf16.mxu0 0
    %114 = vmatpush2.bf16.msra.mxu0 0
    %115 = vmatprep.subr.bf16.mxu0 0
    %116 = vmatpush2.bf16.msra.mxu0 0
    %117 = vmatprep.subr.bf16.mxu0 0
    %118 = vmatpush2.bf16.msra.mxu0 0
    %119 = vmatprep.subr.bf16.mxu0 0
    %120 = vmatpush2.bf16.msra.mxu0 0
    %121 = vmatprep.subr.bf16.mxu0 0
    %122 = vmatpush2.bf16.msra.mxu0 0
    %123 = vmatprep.subr.bf16.mxu0 0
    %124 = vmatpush2.bf16.msra.mxu0 0
    %125 = vmatprep.subr.bf16.mxu0 0
    %126 = vmatpush2.bf16.msra.mxu0 0
    %127 = vmatprep.mubr.bf16.mxu0 0
    %128 = vmatmul.mubr.bf16.gmra.mxu0 %v83
    %v129 = vpop.f32.mrf.mxu0
    %v130 = vadd.f32 %v56, %v129
    %v131 = vpop.f32.mrf.mxu0
    %v132 = vadd.f32 %v60, %v131
    %v133 = vpop.f32.mrf.mxu0
    %v134 = vadd.f32 %v56, %v133
    %v135 = vpop.f32.mrf.mxu0
    %v136 = vadd.f32 %v60, %v135
    %137 = vdwg.mxu0
    %138 = vmatprep.subr.bf16.mxu0 0
    %139 = vmatpush1.bf16.msra.mxu0 0
    %140 = vmatprep.subr.bf16.mxu0 0
    %141 = vmatpush1.bf16.msra.mxu0 0
    %142 = vmatprep.subr.bf16.mxu0 0
    %143 = vmatpush1.bf16.msra.mxu0 0
    %144 = vmatprep.subr.bf16.mxu0 0
    %145 = vmatpush1.bf16.msra.mxu0 0
    %146 = vmatprep.subr.bf16.mxu0 0
    %147 = vmatpush1.bf16.msra.mxu0 0
    %148 = vmatprep.subr.bf16.mxu0 0
    %149 = vmatpush1.bf16.msra.mxu0 0
    %150 = vmatprep.subr.bf16.mxu0 0
    %151 = vmatpush1.bf16.msra.mxu0 0
    %152 = vmatprep.subr.bf16.mxu0 0
    %153 = vmatpush1.bf16.msra.mxu0 %v93
    %154 = vmatprep.subr.bf16.mxu0 0
    %155 = vmatpush2.bf16.msra.mxu0 0
    %156 = vmatprep.subr.bf16.mxu0 0
    %157 = vmatpush2.bf16.msra.mxu0 0
    %158 = vmatprep.subr.bf16.mxu0 0
    %159 = vmatpush2.bf16.msra.mxu0 0
    %160 = vmatprep.subr.bf16.mxu0 0
    %161 = vmatpush2.bf16.msra.mxu0 0
    %162 = vmatprep.subr.bf16.mxu0 0
    %163 = vmatpush2.bf16.msra.mxu0 0
    %164 = vmatprep.subr.bf16.mxu0 0
    %165 = vmatpush2.bf16.msra.mxu0 0
    %166 = vmatprep.subr.bf16.mxu0 0
    %167 = vmatpush2.bf16.msra.mxu0 0
    %168 = vmatprep.subr.bf16.mxu0 0
    %169 = vmatpush2.bf16.msra.mxu0 0
    %170 = vmatprep.mubr.bf16.mxu0 0
    %171 = vmatmul.mubr.bf16.gmra.mxu0 %v83
    %v172 = vpop.f32.mrf.mxu0
    %v173 = vadd.f32 %v64, %v172
    %v174 = vpop.f32.mrf.mxu0
    %v175 = vpop.f32.mrf.mxu0
    %v176 = vadd.f32 %v64, %v175
    %v177 = vpop.f32.mrf.mxu0
    %178 = vdwg.mxu0
    %179 = vst [vmem:[#allocation7] sm:$0xff] %v130
    %180 = vst [vmem:[#allocation7 + $0x8] sm:$0xff] %v132
    %181 = vst [vmem:[#allocation7 + $0x10] sm:$0xff] %v173
    %182 = vst [vmem:[#allocation7 + $0x18] sm:$0xff] %v134
    %183 = vst [vmem:[#allocation7 + $0x20] sm:$0xff] %v136
    %184 = vst [vmem:[#allocation7 + $0x28] sm:$0xff] %v176
    // Predicated region
    $region22: #{tpu_custom_call.1} parent=1 // pred_check
      _
    $region23: #{tpu_custom_call.1} parent=1 // pred_check_branch
      %186 = sbr.rel (0) target = $region25
    $region24: #{tpu_custom_call.1} parent=1 // pred_region
      %s188 = ssub.s32 768, 768
      %189 = vsyncadd [#allocation4], %s188
      %s190 = sshll.u32 [#allocation7], 4
      %s191 = int_to_ptr.vmem [resolvable:$true] %s190
      %196 = dma.vmem_to_hbm [thread:$0]  %s191, 768, %s3, [#allocation4], 384, 384, 24
    $region25: #{tpu_custom_call.1} parent=1 // pred_fallthru
      _
    // Predicated region
    $region26: #{tpu_custom_call.1} parent=1 // pred_check
      _
    $region27: #{tpu_custom_call.1} parent=1 // pred_check_branch
      %198 = sbr.rel (0) target = $region29
    $region28: #{tpu_custom_call.1} parent=1 // pred_region
      %199 = dma.done [#allocation4], 768
    $region29: #{tpu_custom_call.1} parent=1 // pred_fallthru
      _
    %200 = vsyncpa [#allocation3], 1
    %201 = vsyncpa [#allocation6], 1
    %202 = vsyncpa [#allocation4], 1

</llo_original>
